<compile_context>
chip_gen: v7x
topology: tpu7x:2x2x1
jax: 0.10.0
libtpu: 0.0.40
codegen_flags: <defaults>
</compile_context>

<pallas_src>
import functools

import jax
import jax.numpy as jnp
import numpy as np
from jax.experimental import pallas as pl
from jax.experimental.pallas import tpu as pltpu


def _vmem_capacity_bytes():
    """Physical VMEM per TensorCore (128 MiB on v5e/v6e, 64 MiB on v7x)."""
    try:
        info = pltpu.get_tpu_info()
        cap = getattr(info, "vmem_capacity_bytes", None)
        if cap:
            return int(cap)
    except Exception:
        pass
    return 64 << 20  # conservative fallback (v7x per-TC)


def _choose_tile(n_elems, num_q, ret_losses, row_align, vmem_capacity):
    """Pick (rows_per_tile, lane) for the lane-dense [R, LANE] layout.

    The double-buffered working set is sized against ~1/4 of physical VMEM
    (capped at 32 MiB): ~32 MiB on v5e/v6e, ~16 MiB on v7x, keeping per-step
    DMA well above the ~0.35 us grid-step overhead on every generation.
    Streams = target + Q preds (+ Q losses only when they are emitted).
    itemsize is taken as 4 (f32), conservative for bf16 inputs.
    """
    budget = min(32 << 20, max(8 << 20, vmem_capacity // 4))
    lane = 512 if n_elems >= 8 * 512 else 128
    rows_needed = -(-n_elems // lane)
    rows_needed = -(-rows_needed // row_align) * row_align
    streams = 1 + (2 * num_q if ret_losses else num_q)
    per_row_bytes = 2 * streams * lane * 4          # 2x = double buffering
    rows = max(row_align, (budget // per_row_bytes) // row_align * row_align)
    rows = min(int(rows), int(rows_needed), 2048)
    return int(rows), int(lane)


def _qloss_kernel(quantiles, weights, penalty_idx, emit_losses,
                  thr_ref, target_ref, preds_ref, *out_refs):
    """One independent row-tile per grid step (no cross-step state -> parallel).

    thr_ref:     (1,) f32 in SMEM       -- mean(target) + std(target)
    target_ref:  (TR, LANE)             -- target tile
    preds_ref:   (Q, TR, LANE)          -- per-quantile prediction tiles
    partial_ref: (1, 8, 128) f32        -- this tile's partial of
                                           sum(pinball) + 3*sum(hve) (broadcast)
    losses_ref:  (Q, TR, LANE)          -- weighted pinball losses (optional)
    """
    if emit_losses:
        partial_ref, losses_ref = out_refs
    else:
        (partial_ref,) = out_refs
        losses_ref = None

    t = target_ref[...].astype(jnp.float32)

    # Fused elementwise combine: one tile temp, one reduction per step.
    combined = None
    for i, (q, w) in enumerate(zip(quantiles, weights)):
        e = t - preds_ref[i].astype(jnp.float32)
        ql = jnp.maximum((q - 1.0) * e, q * e) * w
        if emit_losses:
            losses_ref[i] = ql.astype(losses_ref.dtype)
        combined = ql if combined is None else combined + ql

    # High-value penalty: |target - preds[penalty_idx]| where target > mean+std.
    thr = thr_ref[0]
    mask = (t > thr).astype(jnp.float32)
    hve = jnp.abs(t - preds_ref[penalty_idx].astype(jnp.float32)) * mask
    combined = combined + 3.0 * hve

    # Single full-tile -> scalar reduce per step; broadcast into the partial
    # block (lane-dense (8,128) block keeps the store unmasked).
    partial = jnp.sum(combined)
    partial_ref[...] = jnp.zeros(partial_ref.shape, jnp.float32) + partial


def quantile_loss(preds, target, quantiles, weights=(1.0, 1.0, 1.0),
                  ret_losses=True, preds_layout="btq", tile=None,
                  losses_dtype=None):
    """preds: [B, T, Q] (PyTorch layout) or [Q, B, T] if preds_layout == 'qbt'.
    target: [B, T].  Returns (loss, [per-quantile [B,1,T] losses]) or loss."""
    quantiles = tuple(float(q) for q in quantiles)
    weights = tuple(float(w) for w in weights)
    Q = len(quantiles)
    # PyTorch hard-codes preds[:, :, 2] for the high-value penalty: require Q >= 3
    # (otherwise this would be a silent out-of-bounds VMEM read on TPU).
    assert Q >= 3, "QuantileLoss requires at least 3 quantiles (penalty uses index 2)"
    assert len(weights) == Q

    if preds_layout == "btq":
        B, T, Qp = preds.shape
        assert Qp == Q
        # TODO(synk): producers should emit preds already in [Q, B, T] ('qbt')
        # to avoid this materialized re-read/write of all of preds before the
        # kernel (reading Q=3 in the lane dim in-kernel would be lane-sparse
        # and worse than the transpose).
        preds_q = jnp.transpose(preds, (2, 0, 1)).reshape(Q, B * T)
    elif preds_layout == "qbt":
        Qp, B, T = preds.shape
        assert Qp == Q
        preds_q = preds.reshape(Q, B * T)
    else:
        raise ValueError(f"unknown preds_layout {preds_layout!r}")
    assert target.shape == (B, T)

    N = B * T
    target_flat = target.reshape(N)
    if losses_dtype is None:
        losses_dtype = preds.dtype

    # Threshold pre-pass: single read of target (sum and sum-of-squares fuse
    # into one reduction), torch.std-style unbiased variance, clamped >= 0.
    t32 = target_flat.astype(jnp.float32)
    sum_t = jnp.sum(t32)
    sum_t2 = jnp.sum(t32 * t32)
    mean = sum_t / N
    denom = max(N - 1, 1)                      # guard N == 1
    var = jnp.maximum((sum_t2 - N * mean * mean) / denom, 0.0)
    thr = (mean + jnp.sqrt(var)).reshape(1).astype(jnp.float32)

    # Lane-dense tiling (chip- and ret_losses-aware).
    itemsize = min(preds_q.dtype.itemsize, target.dtype.itemsize)
    row_align = 8 * max(1, 4 // max(1, itemsize))   # 8 (f32) / 16 (bf16) / 32 (i8)
    vmem_capacity = _vmem_capacity_bytes()
    if tile is None:
        rows_per_tile, lane = _choose_tile(N, Q, ret_losses, row_align,
                                           vmem_capacity)
    else:
        rows_per_tile, lane = tile
    assert rows_per_tile % row_align == 0 and lane % 128 == 0

    rows_needed = -(-N // lane)
    n_tiles = max(1, -(-rows_needed // rows_per_tile))
    R_total = n_tiles * rows_per_tile
    N_pad = R_total * lane
    pad = N_pad - N
    if pad:
        # Zero-pad BOTH target and preds (see padding invariant above).
        target_flat = jnp.concatenate(
            [target_flat, jnp.zeros((pad,), target_flat.dtype)])
        preds_q = jnp.concatenate(
            [preds_q, jnp.zeros((Q, pad), preds_q.dtype)], axis=1)
    target2d = target_flat.reshape(R_total, lane)
    preds3d = preds_q.reshape(Q, R_total, lane)

    # VMEM limit: double-buffered streams + headroom for Mosaic elementwise
    # temps (e / ql / hve / combined can each materialize a tile), capped near
    # 40% of physical VMEM (matters on v7x's 64 MiB/TC, harmless on v5e/v6e),
    # but never below the actual working set.
    tile_bytes = rows_per_tile * lane * 4
    streams = 1 + (2 * Q if ret_losses else Q)
    working = 2 * streams * tile_bytes
    vmem_limit = working + 4 * tile_bytes + (4 << 20)
    cap40 = (vmem_capacity * 2) // 5
    vmem_limit = int(max(16 << 20,
                         min(vmem_limit, max(cap40, working + (2 << 20)))))

    kernel = functools.partial(_qloss_kernel, quantiles, weights, 2, ret_losses)

    in_specs = [
        pl.BlockSpec(memory_space=pltpu.MemorySpace.SMEM),             # threshold
        pl.BlockSpec((rows_per_tile, lane), lambda i: (i, 0)),         # target
        pl.BlockSpec((Q, rows_per_tile, lane), lambda i: (0, i, 0)),   # preds
    ]
    # Per-tile partial sums: lets the grid axis be "parallel" (megacore on v7x)
    # and replaces the long serial scalar accumulation with a tiny wrapper sum.
    out_shapes = [jax.ShapeDtypeStruct((n_tiles, 8, 128), jnp.float32)]
    out_specs = [pl.BlockSpec((1, 8, 128), lambda i: (i, 0, 0))]
    if ret_losses:
        out_shapes.append(jax.ShapeDtypeStruct((Q, R_total, lane), losses_dtype))
        out_specs.append(pl.BlockSpec((Q, rows_per_tile, lane),
                                      lambda i: (0, i, 0)))

    outs = pl.pallas_call(
        kernel,
        grid_spec=pltpu.PrefetchScalarGridSpec(
            num_scalar_prefetch=0,
            grid=(n_tiles,),
            in_specs=in_specs,
            out_specs=tuple(out_specs)),
        out_shape=tuple(out_shapes),
        compiler_params=pltpu.CompilerParams(
            dimension_semantics=("parallel",),
            vmem_limit_bytes=vmem_limit),
    )(thr, target2d, preds3d)

    if ret_losses:
        partials, losses_pad = outs
    else:
        (partials,) = outs
    loss_scalar = jnp.sum(partials[:, 0, 0]) * (1.0 / N)
    if not ret_losses:
        return loss_scalar

    losses_flat = losses_pad.reshape(Q, N_pad)[:, :N].reshape(Q, B, T)
    # Match PyTorch: list of [B, 1, T] per-quantile weighted pinball losses.
    losses_list = [losses_flat[i][:, None, :] for i in range(Q)]
    return loss_scalar, losses_list


def _reference(preds, target, quantiles, weights):
    preds = np.asarray(preds, np.float32)
    target = np.asarray(target, np.float32)
    losses = []
    for i, q in enumerate(quantiles):
        e = target - preds[:, :, i]
        ql = np.maximum((q - 1.0) * e, q * e)[:, None, :] * weights[i]
        losses.append(ql)
    stacked = np.concatenate(losses, axis=1)            # [B, Q, T]
    loss = stacked.sum(axis=1).mean()
    mean = target.mean()
    std = target.std(ddof=1)                            # torch.std default (unbiased)
    mask = (target > mean + std).astype(np.float32)
    hve = np.abs(target - preds[:, :, 2]) * mask
    loss = loss + hve.mean() * 3.0
    return loss, losses


if __name__ == "__main__":
    quantiles = [0.1, 0.5, 0.9]
    weights = [1.0, 1.0, 1.0]

    key = jax.random.PRNGKey(0)
    k1, k2, k3, k4, k5, k6 = jax.random.split(key, 6)

    # --- case 1: tiny PyTorch-shaped input (single padded tile) ---------------
    B, T = 2, 16
    preds = jax.random.normal(k1, (B, T, len(quantiles)), dtype=jnp.float32)
    target = jax.random.normal(k2, (B, T), dtype=jnp.float32)

    loss, losses = quantile_loss(preds, target, quantiles, weights, ret_losses=True)
    loss = jax.block_until_ready(loss)
    losses = [jax.block_until_ready(l) for l in losses]

    ref_loss, ref_losses = _reference(np.asarray(preds), np.asarray(target),
                                      quantiles, weights)
    assert np.allclose(np.asarray(loss), ref_loss, rtol=1e-4, atol=1e-5), \
        (float(loss), float(ref_loss))
    for got, want in zip(losses, ref_losses):
        assert got.shape == want.shape
        assert np.allclose(np.asarray(got), want, rtol=1e-5, atol=1e-6)

    # scalar-only fast path (no [Q,B,T] losses writeback)
    loss_only = jax.block_until_ready(
        quantile_loss(preds, target, quantiles, weights, ret_losses=False))
    assert np.allclose(np.asarray(loss_only), ref_loss, rtol=1e-4, atol=1e-5)

    # --- case 2: multi-tile "parallel" streaming path (forced small tile) -----
    B2, T2 = 4, 512
    preds2 = jax.random.normal(k3, (B2, T2, len(quantiles)), dtype=jnp.float32)
    target2 = jax.random.normal(k4, (B2, T2), dtype=jnp.float32)
    loss2, losses2 = quantile_loss(preds2, target2, quantiles, weights,
                                   ret_losses=True, tile=(8, 128))
    loss2 = jax.block_until_ready(loss2)
    losses2 = [jax.block_until_ready(l) for l in losses2]
    ref_loss2, ref_losses2 = _reference(np.asarray(preds2), np.asarray(target2),
                                        quantiles, weights)
    assert np.allclose(np.asarray(loss2), ref_loss2, rtol=1e-4, atol=1e-4), \
        (float(loss2), float(ref_loss2))
    for got, want in zip(losses2, ref_losses2):
        assert np.allclose(np.asarray(got), want, rtol=1e-5, atol=1e-6)

    # same data through the transpose-free 'qbt' producer layout
    preds2_qbt = jnp.transpose(preds2, (2, 0, 1))
    loss2_qbt = jax.block_until_ready(
        quantile_loss(preds2_qbt, target2, quantiles, weights,
                      ret_losses=False, preds_layout="qbt", tile=(8, 128)))
    assert np.allclose(np.asarray(loss2_qbt), ref_loss2, rtol=1e-4, atol=1e-4)

    # --- case 3: bf16 inputs, scalar-only fast path (no upcast pre-pass) ------
    B3, T3 = 4, 2048
    preds3 = jax.random.normal(k5, (B3, T3, len(quantiles)), dtype=jnp.bfloat16)
    target3 = jax.random.normal(k6, (B3, T3), dtype=jnp.bfloat16)
    loss3 = jax.block_until_ready(
        quantile_loss(preds3, target3, quantiles, weights, ret_losses=False))
    ref_loss3, _ = _reference(np.asarray(preds3.astype(jnp.float32)),
                              np.asarray(target3.astype(jnp.float32)),
                              quantiles, weights)
    assert np.allclose(np.asarray(loss3), ref_loss3, rtol=5e-3, atol=5e-3), \
        (float(loss3), float(ref_loss3))

    print("KERNEL_OK")
</pallas_src>

<mosaic_0001>
module attributes {stable_mosaic.version = 11 : i64} {
  func.func @_qloss_kernel(%arg0: i32, %arg1: memref<1xf32, #tpu.memory_space<smem>>, %arg2: memref<8x128xf32, #tpu.memory_space<vmem>>, %arg3: memref<3x8x128xf32, #tpu.memory_space<vmem>>, %arg4: memref<1x8x128xf32, #tpu.memory_space<vmem>>, %arg5: memref<3x8x128xf32, #tpu.memory_space<vmem>>) attributes {dimension_semantics = [#tpu.dimension_semantics<parallel>], iteration_bounds = array<i64: 1>, scalar_prefetch = 0 : i64, scratch_operands = 0 : i64, tpu.core_type = #tpu.core_type<tc>, window_params = [{transform_indices = @transform_0, window_bounds = array<i64: 1>}, {transform_indices = @transform_1, window_bounds = array<i64: 8, 128>}, {transform_indices = @transform_2, window_bounds = array<i64: 3, 8, 128>}, {transform_indices = @transform_3, window_bounds = array<i64: 1, 8, 128>}, {transform_indices = @transform_4, window_bounds = array<i64: 3, 8, 128>}]} {
    %c0 = arith.constant 0 : index
    %c0_0 = arith.constant 0 : index
    %0 = vector.load %arg2[%c0, %c0_0] : memref<8x128xf32, #tpu.memory_space<vmem>>, vector<8x128xf32>
    %c0_1 = arith.constant 0 : index
    %c0_2 = arith.constant 0 : index
    %c0_3 = arith.constant 0 : index
    %1 = vector.load %arg3[%c0_1, %c0_2, %c0_3] : memref<3x8x128xf32, #tpu.memory_space<vmem>>, vector<1x8x128xf32>
    %2 = vector.shape_cast %1 : vector<1x8x128xf32> to vector<8x128xf32>
    %3 = arith.subf %0, %2 : vector<8x128xf32>
    %cst = arith.constant -0.899999976 : f32
    %4 = vector.broadcast %cst : f32 to vector<8x128xf32>
    %5 = arith.mulf %4, %3 : vector<8x128xf32>
    %cst_4 = arith.constant 1.000000e-01 : f32
    %6 = vector.broadcast %cst_4 : f32 to vector<8x128xf32>
    %7 = arith.mulf %6, %3 : vector<8x128xf32>
    %8 = arith.maximumf %5, %7 : vector<8x128xf32>
    %cst_5 = arith.constant 1.000000e+00 : f32
    %9 = vector.broadcast %cst_5 : f32 to vector<8x128xf32>
    %10 = arith.mulf %8, %9 : vector<8x128xf32>
    %c0_6 = arith.constant 0 : index
    %c0_7 = arith.constant 0 : index
    %c0_8 = arith.constant 0 : index
    %11 = vector.load %arg5[%c0_6, %c0_7, %c0_8] : memref<3x8x128xf32, #tpu.memory_space<vmem>>, vector<1x8x128xf32>
    %12 = vector.shape_cast %11 : vector<1x8x128xf32> to vector<8x128xf32>
    %13 = vector.shape_cast %10 : vector<8x128xf32> to vector<1x8x128xf32>
    tpu.vector_store %arg5[%c0_6, %c0_7, %c0_8], %13 {strides = array<i32>} : memref<3x8x128xf32, #tpu.memory_space<vmem>>, vector<1x8x128xf32>,
    %c1 = arith.constant 1 : index
    %c0_9 = arith.constant 0 : index
    %c0_10 = arith.constant 0 : index
    %14 = vector.load %arg3[%c1, %c0_9, %c0_10] : memref<3x8x128xf32, #tpu.memory_space<vmem>>, vector<1x8x128xf32>
    %15 = vector.shape_cast %14 : vector<1x8x128xf32> to vector<8x128xf32>
    %16 = arith.subf %0, %15 : vector<8x128xf32>
    %cst_11 = arith.constant -5.000000e-01 : f32
    %17 = vector.broadcast %cst_11 : f32 to vector<8x128xf32>
    %18 = arith.mulf %17, %16 : vector<8x128xf32>
    %cst_12 = arith.constant 5.000000e-01 : f32
    %19 = vector.broadcast %cst_12 : f32 to vector<8x128xf32>
    %20 = arith.mulf %19, %16 : vector<8x128xf32>
    %21 = arith.maximumf %18, %20 : vector<8x128xf32>
    %cst_13 = arith.constant 1.000000e+00 : f32
    %22 = vector.broadcast %cst_13 : f32 to vector<8x128xf32>
    %23 = arith.mulf %21, %22 : vector<8x128xf32>
    %c1_14 = arith.constant 1 : index
    %c0_15 = arith.constant 0 : index
    %c0_16 = arith.constant 0 : index
    %24 = vector.load %arg5[%c1_14, %c0_15, %c0_16] : memref<3x8x128xf32, #tpu.memory_space<vmem>>, vector<1x8x128xf32>
    %25 = vector.shape_cast %24 : vector<1x8x128xf32> to vector<8x128xf32>
    %26 = vector.shape_cast %23 : vector<8x128xf32> to vector<1x8x128xf32>
    tpu.vector_store %arg5[%c1_14, %c0_15, %c0_16], %26 {strides = array<i32>} : memref<3x8x128xf32, #tpu.memory_space<vmem>>, vector<1x8x128xf32>,
    %27 = arith.addf %10, %23 : vector<8x128xf32>
    %c2 = arith.constant 2 : index
    %c0_17 = arith.constant 0 : index
    %c0_18 = arith.constant 0 : index
    %28 = vector.load %arg3[%c2, %c0_17, %c0_18] : memref<3x8x128xf32, #tpu.memory_space<vmem>>, vector<1x8x128xf32>
    %29 = vector.shape_cast %28 : vector<1x8x128xf32> to vector<8x128xf32>
    %30 = arith.subf %0, %29 : vector<8x128xf32>
    %cst_19 = arith.constant -1.000000e-01 : f32
    %31 = vector.broadcast %cst_19 : f32 to vector<8x128xf32>
    %32 = arith.mulf %31, %30 : vector<8x128xf32>
    %cst_20 = arith.constant 0.899999976 : f32
    %33 = vector.broadcast %cst_20 : f32 to vector<8x128xf32>
    %34 = arith.mulf %33, %30 : vector<8x128xf32>
    %35 = arith.maximumf %32, %34 : vector<8x128xf32>
    %cst_21 = arith.constant 1.000000e+00 : f32
    %36 = vector.broadcast %cst_21 : f32 to vector<8x128xf32>
    %37 = arith.mulf %35, %36 : vector<8x128xf32>
    %c2_22 = arith.constant 2 : index
    %c0_23 = arith.constant 0 : index
    %c0_24 = arith.constant 0 : index
    %38 = vector.load %arg5[%c2_22, %c0_23, %c0_24] : memref<3x8x128xf32, #tpu.memory_space<vmem>>, vector<1x8x128xf32>
    %39 = vector.shape_cast %38 : vector<1x8x128xf32> to vector<8x128xf32>
    %40 = vector.shape_cast %37 : vector<8x128xf32> to vector<1x8x128xf32>
    tpu.vector_store %arg5[%c2_22, %c0_23, %c0_24], %40 {strides = array<i32>} : memref<3x8x128xf32, #tpu.memory_space<vmem>>, vector<1x8x128xf32>,
    %41 = arith.addf %27, %37 : vector<8x128xf32>
    %c0_25 = arith.constant 0 : index
    %42 = memref.load %arg1[%c0_25] : memref<1xf32, #tpu.memory_space<smem>>
    %43 = vector.broadcast %42 : f32 to vector<8x128xf32>
    %44 = arith.cmpf ogt, %0, %43 : vector<8x128xf32>
    %45 = arith.extui %44 : vector<8x128xi1> to vector<8x128xi32>
    %46 = arith.sitofp %45 : vector<8x128xi32> to vector<8x128xf32>
    %c2_26 = arith.constant 2 : index
    %c0_27 = arith.constant 0 : index
    %c0_28 = arith.constant 0 : index
    %47 = vector.load %arg3[%c2_26, %c0_27, %c0_28] : memref<3x8x128xf32, #tpu.memory_space<vmem>>, vector<1x8x128xf32>
    %48 = vector.shape_cast %47 : vector<1x8x128xf32> to vector<8x128xf32>
    %49 = arith.subf %0, %48 : vector<8x128xf32>
    %50 = math.absf %49 : vector<8x128xf32>
    %51 = arith.mulf %50, %46 : vector<8x128xf32>
    %cst_29 = arith.constant 3.000000e+00 : f32
    %52 = vector.broadcast %cst_29 : f32 to vector<8x128xf32>
    %53 = arith.mulf %52, %51 : vector<8x128xf32>
    %54 = arith.addf %41, %53 : vector<8x128xf32>
    %55 = vector.shape_cast %54 : vector<8x128xf32> to vector<1x8x128xf32>
    %cst_30 = arith.constant dense<0.000000e+00> : vector<1xf32>
    %56 = vector.multi_reduction <add>, %55, %cst_30 [1, 2] : vector<1x8x128xf32> to vector<1xf32>
    %57 = vector.shape_cast %56 : vector<1xf32> to vector<1x1x1xf32>
    %58 = vector.extract %57[0, 0, 0] : f32 from vector<1x1x1xf32>
    %cst_31 = arith.constant 0.000000e+00 : f32
    %59 = vector.broadcast %cst_31 : f32 to vector<1x8x128xf32>
    %60 = vector.broadcast %58 : f32 to vector<1x8x128xf32>
    %61 = arith.addf %59, %60 : vector<1x8x128xf32>
    %c0_32 = arith.constant 0 : index
    %c0_33 = arith.constant 0 : index
    %c0_34 = arith.constant 0 : index
    %62 = vector.load %arg4[%c0_32, %c0_33, %c0_34] : memref<1x8x128xf32, #tpu.memory_space<vmem>>, vector<1x8x128xf32>
    tpu.vector_store %arg4[%c0_32, %c0_33, %c0_34], %61 {strides = array<i32>} : memref<1x8x128xf32, #tpu.memory_space<vmem>>, vector<1x8x128xf32>,
    return
  }
  func.func @transform_0(%arg0: i32) -> i32 {
    %c0_i32 = arith.constant 0 : i32
    %c0_i32_0 = arith.constant 0 : i32
    return %c0_i32 : i32
  }
  func.func @transform_1(%arg0: i32) -> (i32, i32) {
    %c0_i32 = arith.constant 0 : i32
    %c0_i32_0 = arith.constant 0 : i32
    return %arg0, %c0_i32 : i32, i32
  }
  func.func @transform_2(%arg0: i32) -> (i32, i32, i32) {
    %c0_i32 = arith.constant 0 : i32
    %c0_i32_0 = arith.constant 0 : i32
    %c0_i32_1 = arith.constant 0 : i32
    return %c0_i32, %arg0, %c0_i32_0 : i32, i32, i32
  }
  func.func @transform_3(%arg0: i32) -> (i32, i32, i32) {
    %c0_i32 = arith.constant 0 : i32
    %c0_i32_0 = arith.constant 0 : i32
    %c0_i32_1 = arith.constant 0 : i32
    return %arg0, %c0_i32, %c0_i32_0 : i32, i32, i32
  }
  func.func @transform_4(%arg0: i32) -> (i32, i32, i32) {
    %c0_i32 = arith.constant 0 : i32
    %c0_i32_0 = arith.constant 0 : i32
    %c0_i32_1 = arith.constant 0 : i32
    return %c0_i32, %arg0, %c0_i32_0 : i32, i32, i32
  }
}

</mosaic_0001>

<llo_original>
// kernel: tpu_custom_call.1
$region0: #{tpu_custom_call.1}
  #allocation0 [shape = 'u32[]', space=smem, size = 0x4, offset = 0x4, fixed_abs, tag = 'smem constant byte address 0x4 - core index']
  #allocation1 [shape = 'u32[144,128]{1,0:T(1,128)}', space=vmem, size = 0x12000, scoped, tag = 'internal scratch']
  #allocation2 [shape = 'f32[1]{0:T(128)S(6)}', space=smem, size = 0x200, scoped, tag = 'scoped memory for tpu_custom_call.1']
  %s0 = inlined_call_operand.<no memory space> [shape: f32[1], index: 0, kind: input, shape index: {}]
  %s1 = inlined_call_operand.hbm [shape: f32[8,128], index: 1, kind: input, shape index: {}]
  %s2 = inlined_call_operand.hbm [shape: f32[3,8,128], index: 2, kind: input, shape index: {}]
  %s3 = inlined_call_operand.hbm [shape: f32[1,8,128], index: 3, kind: output, shape index: {0}]
  %s4 = inlined_call_operand.hbm [shape: f32[3,8,128], index: 4, kind: output, shape index: {1}]
  %5 = xla_tuple %s3, %s4
  %s6 = sld [smem:[#allocation0]]
  $region38: #{tpu_custom_call.1} parent=0
    _
  %s8 = ssub.s32 1, %s6
  %s9 = scalar_select 0, %s8, %s6
  %10 = sst [smem:[#allocation2]] %s0
  $region1: #{tpu_custom_call.1} parent=0
    #allocation3 [shape = 'u8[4096]{0}', space=vmem, size = 0x1000, scoped, tag = 'input window, operand 1, single buffered']
    #allocation4 [shape = 's32[1]{0}', space=sflag, size = 0x4, scoped, tag = 'scoped memory for tpu_custom_call.1']
    #allocation5 [shape = 's32[1]{0}', space=sflag, size = 0x4, scoped, tag = 'scoped memory for tpu_custom_call.1']
    #allocation6 [shape = 'u8[12288]{0}', space=vmem, size = 0x3000, scoped, tag = 'input window, operand 2, single buffered']
    #allocation7 [shape = 's32[1]{0}', space=sflag, size = 0x4, scoped, tag = 'scoped memory for tpu_custom_call.1']
    #allocation8 [shape = 'u8[4096]{0}', space=vmem, size = 0x1000, scoped, tag = 'output window, operand 0, single buffered']
    #allocation9 [shape = 'u8[12288]{0}', space=vmem, size = 0x3000, scoped, tag = 'output window, operand 1, single buffered']
    #allocation10 [shape = 's32[1]{0}', space=sflag, size = 0x4, scoped, tag = 'scoped memory for tpu_custom_call.1']
    %11 = vsyncpa [#allocation4], 0
    %12 = vsyncpa [#allocation7], 0
    %13 = vsyncpa [#allocation5], 0
    %14 = vsyncpa [#allocation10], 0
    // Predicated region
    $region2: #{tpu_custom_call.1} parent=1 // pred_check
      _
    $region3: #{tpu_custom_call.1} parent=1 // pred_check_branch
      %16 = sbr.rel (0) target = $region5
    $region4: #{tpu_custom_call.1} parent=1 // pred_region
      _
    $region5: #{tpu_custom_call.1} parent=1 // pred_fallthru
      _
    // Predicated region
    $region6: #{tpu_custom_call.1} parent=1 // pred_check
      _
    $region7: #{tpu_custom_call.1} parent=1 // pred_check_branch
      %18 = sbr.rel (0) target = $region9
    $region8: #{tpu_custom_call.1} parent=1 // pred_region
      %s20 = ssub.s32 128, 128
      %21 = vsyncadd [#allocation4], %s20
      %s23 = sshll.u32 [#allocation3], 4
      %s24 = int_to_ptr.vmem [resolvable:$true] %s23
      %26 = dma.hbm_to_vmem [thread:$0]  %s1, 128, %s24, [#allocation4]
    $region9: #{tpu_custom_call.1} parent=1 // pred_fallthru
      _
    // Predicated region
    $region10: #{tpu_custom_call.1} parent=1 // pred_check
      _
    $region11: #{tpu_custom_call.1} parent=1 // pred_check_branch
      %28 = sbr.rel (0) target = $region13
    $region12: #{tpu_custom_call.1} parent=1 // pred_region
      %s30 = ssub.s32 384, 384
      %31 = vsyncadd [#allocation7], %s30
      %s32 = sshll.u32 [#allocation6], 4
      %s33 = int_to_ptr.vmem [resolvable:$true] %s32
      %38 = dma.hbm_to_vmem [thread:$0]  %s2, 384, %s33, [#allocation7], 128, 128, 8
    $region13: #{tpu_custom_call.1} parent=1 // pred_fallthru
      _
    // Predicated region
    $region14: #{tpu_custom_call.1} parent=1 // pred_check
      _
    $region15: #{tpu_custom_call.1} parent=1 // pred_check_branch
      %40 = sbr.rel (0) target = $region17
    $region16: #{tpu_custom_call.1} parent=1 // pred_region
      %41 = dma.done [#allocation4], 128
    $region17: #{tpu_custom_call.1} parent=1 // pred_fallthru
      _
    // Predicated region
    $region18: #{tpu_custom_call.1} parent=1 // pred_check
      _
    $region19: #{tpu_custom_call.1} parent=1 // pred_check_branch
      %43 = sbr.rel (0) target = $region21
    $region20: #{tpu_custom_call.1} parent=1 // pred_region
      %44 = dma.done [#allocation7], 384
    $region21: #{tpu_custom_call.1} parent=1 // pred_fallthru
      _
    %v45 = vld [vmem:[#allocation3] sm:$0xff]
    %v46 = vld [vmem:[#allocation6] sm:$0xff]
    %v47 = vsub.f32 %v45, %v46
    %v48 = vmul.f32 %v47, -0.9
    %v49 = vmul.f32 %v47, 0.1
    %v50 = vmax.f32 %v48, %v49
    %51 = vst [vmem:[#allocation9] sm:$0xff] %v50
    %s52 = scalar_lea.vmem [#allocation6], 8
    %v53 = vld [vmem:[%s52] sm:$0xff]
    %v54 = vsub.f32 %v45, %v53
    %v55 = vmul.f32 %v54, -0.5
    %v56 = vmul.f32 %v54, 0.5
    %v57 = vmax.f32 %v55, %v56
    %s58 = scalar_lea.vmem [#allocation9], 8
    %59 = vst [vmem:[%s58] sm:$0xff] %v57
    %v60 = vadd.f32 %v50, %v57
    %s61 = scalar_lea.vmem [#allocation6], 16
    %v62 = vld [vmem:[%s61] sm:$0xff]
    %v63 = vsub.f32 %v45, %v62
    %v64 = vmul.f32 %v63, -0.1
    %v65 = vmul.f32 %v63, 0.9
    %v66 = vmax.f32 %v64, %v65
    %s67 = scalar_lea.vmem [#allocation9], 16
    %68 = vst [vmem:[%s67] sm:$0xff] %v66
    %v69 = vadd.f32 %v60, %v66
    %s70 = sld [smem:[#allocation2]]
    %v71 = vstv %s70
    %vm72 = vcmp.gt.f32.partialorder %v45, %v71
    %v73 = vsel %vm72, 1, 0
    %v74 = vcvt.s32.f32 %v73
    %v75 = vld [vmem:[%s61] sm:$0xff]
    %v76 = vsub.f32 %v45, %v75
    %v77 = vand.u32 2147483647, %v76
    %v78 = vmul.f32 %v77, %v74
    %v79 = vmul.f32 %v78, 3.0
    %v80 = vadd.f32 %v69, %v79
    %81 = vadd.xlane.f32.xlu0 %v80
    %v82 = vpop.xlane.xlu0 %81
    %v83 = vrot.slane %v82, 4
    %v84 = vadd.f32 %v82, %v83
    %v85 = vrot.slane %v84, 2
    %v86 = vadd.f32 %v84, %v85
    %v87 = vrot.slane %v86, 1
    %v88 = vadd.f32 %v86, %v87
    %s89 = vtos %v88
    %v90 = vstv %s89
    %v91 = vadd.f32 %v90, 0.0
    %92 = vst [vmem:[#allocation8] sm:$0xff] %v91
    // Predicated region
    $region22: #{tpu_custom_call.1} parent=1 // pred_check
      _
    $region23: #{tpu_custom_call.1} parent=1 // pred_check_branch
      %94 = sbr.rel (0) target = $region25
    $region24: #{tpu_custom_call.1} parent=1 // pred_region
      %s96 = ssub.s32 128, 128
      %97 = vsyncadd [#allocation5], %s96
      %s99 = sshll.u32 [#allocation8], 4
      %s100 = int_to_ptr.vmem [resolvable:$true] %s99
      %102 = dma.vmem_to_hbm [thread:$0]  %s100, 128, %s3, [#allocation5]
    $region25: #{tpu_custom_call.1} parent=1 // pred_fallthru
      _
    // Predicated region
    $region26: #{tpu_custom_call.1} parent=1 // pred_check
      _
    $region27: #{tpu_custom_call.1} parent=1 // pred_check_branch
      %104 = sbr.rel (0) target = $region29
    $region28: #{tpu_custom_call.1} parent=1 // pred_region
      %s106 = ssub.s32 384, 384
      %107 = vsyncadd [#allocation10], %s106
      %s108 = sshll.u32 [#allocation9], 4
      %s109 = int_to_ptr.vmem [resolvable:$true] %s108
      %114 = dma.vmem_to_hbm [thread:$0]  %s109, 384, %s4, [#allocation10], 128, 128, 8
    $region29: #{tpu_custom_call.1} parent=1 // pred_fallthru
      _
    // Predicated region
    $region30: #{tpu_custom_call.1} parent=1 // pred_check
      _
    $region31: #{tpu_custom_call.1} parent=1 // pred_check_branch
      %116 = sbr.rel (0) target = $region33
    $region32: #{tpu_custom_call.1} parent=1 // pred_region
      %117 = dma.done [#allocation5], 128
    $region33: #{tpu_custom_call.1} parent=1 // pred_fallthru
      _
    // Predicated region
    $region34: #{tpu_custom_call.1} parent=1 // pred_check
      _
    $region35: #{tpu_custom_call.1} parent=1 // pred_check_branch
      %119 = sbr.rel (0) target = $region37
    $region36: #{tpu_custom_call.1} parent=1 // pred_region
      %120 = dma.done [#allocation10], 384
    $region37: #{tpu_custom_call.1} parent=1 // pred_fallthru
      _
    %121 = vsyncpa [#allocation4], 1
    %122 = vsyncpa [#allocation7], 1
    %123 = vsyncpa [#allocation5], 1
    %124 = vsyncpa [#allocation10], 1

</llo_original>
